<compile_context>
chip_gen: v7x
topology: tpu7x:2x2x1
jax: 0.10.0
libtpu: 0.0.40
codegen_flags: <defaults>
</compile_context>

<pallas_src>
import jax
import jax.numpy as jnp
from jax.experimental import pallas as pl
from jax.experimental.pallas import tpu as pltpu


def _fix_embed_kernel(x_ref, w_ref, b_ref, o_ref):
    """One grid step: 1x1 conv over `th` image rows of one batch element.

    x_ref: (1, C, th*W)   lane-dense spatial tile of NCHW input   (pipelined)
    w_ref: (E, C)         projection weight                       (resident)
    b_ref: (E, 1)         bias                                    (resident)
    o_ref: (1, th, E, W)  output rows, already in final (H, E, W) ordering
    """
    th = o_ref.shape[1]
    w_out = o_ref.shape[3]

    # One big MXU matmul per tile: (E, C) @ (C, th*W) -> (E, th*W).
    # Result lane dim is th*W (>= 128 whenever the shape allows), so MXU
    # utilization no longer scales with the (typically small) image width.
    acc = jnp.dot(w_ref[...], x_ref[0, :, :],
                  preferred_element_type=jnp.float32)
    acc = acc + b_ref[...]                      # (E, 1) broadcasts over lanes

    # Scatter the tile into its final (h, e, w) ordering.  Each slice is the
    # (E, W) window of the result at lane offset h*W; the relayout + masked
    # stores touch only output-sized data and hide under the input DMA of the
    # next grid step.
    for h in range(th):
        row = acc[:, h * w_out:(h + 1) * w_out]          # (E, W)
        o_ref[0, h, :, :] = row.astype(o_ref.dtype)


def _pick_rows_per_step(C, H, W, itemsize, budget_bytes=8 << 20, max_rows=32):
    """Image rows handled per grid step.

    The x block is (1, C, th*W) taken from x reshaped to (B, C, H*W), so its
    minor dim must be a multiple of 128 or the full H*W extent (Pallas block
    rule).  Prefer the largest th that (a) divides H, (b) keeps th*W
    lane-aligned (or covers the full spatial extent), and (c) keeps the
    double-buffered x block under a per-buffer VMEM budget / unroll cap.
    """
    def x_block_bytes(ts):
        lanes = ((ts + 127) // 128) * 128
        sublanes = ((C + 7) // 8) * 8
        return sublanes * lanes * itemsize

    best = 0
    for th in range(1, min(H, max_rows) + 1):
        if H % th:
            continue
        ts = th * W
        if (ts % 128 == 0 or th == H) and x_block_bytes(ts) <= budget_bytes:
            best = th
    if best == 0:
        # No lane-aligned row tile exists (or fits): fall back to one
        # full-spatial block per batch element, which is always a legal
        # BlockSpec (block dim == array dim).  Shapes where even this exceeds
        # VMEM would additionally need a channel-split reduction axis.
        best = H
    return best


def fix_embed_forward(x, weight, bias):
    """x: (B, C, H, W), weight: (E, C), bias: (E,) -> (B, H, E*W)."""
    B, C, H, W = x.shape
    E = weight.shape[0]

    th = _pick_rows_per_step(C, H, W, x.dtype.itemsize)
    ts = th * W
    grid = (B, H // th)

    # Free reshape (merges the two contiguous trailing dims of NCHW): gives
    # the kernel a lane-dense (1, C, th*W) block instead of a W-lane-padded
    # (1, C, th, W) one.  No data movement.
    x_flat = x.reshape(B, C, H * W)

    y = pl.pallas_call(
        _fix_embed_kernel,
        out_shape=jax.ShapeDtypeStruct((B, H, E, W), x.dtype),
        grid_spec=pltpu.PrefetchScalarGridSpec(
            num_scalar_prefetch=0,
            grid=grid,
            in_specs=[
                # Spatial tile of one batch element, straight from NCHW.
                pl.BlockSpec((1, C, ts), lambda b, i: (b, 0, i)),
                # Weight / bias: constant index map -> fetched once, resident.
                pl.BlockSpec((E, C), lambda b, i: (0, 0)),
                pl.BlockSpec((E, 1), lambda b, i: (0, 0)),
            ],
            out_specs=pl.BlockSpec((1, th, E, W), lambda b, i: (b, i, 0, 0)),
        ),
        compiler_params=pltpu.CompilerParams(
            dimension_semantics=("parallel", "parallel"),
            vmem_limit_bytes=48 * 1024 * 1024,
        ),
    )(x_flat, weight, bias.reshape(E, 1))

    # Trailing merge of the two already-ordered minor dims: metadata-only
    # reshape, no XLA transpose / copy pass over the output remains.
    return y.reshape(B, H, E * W)


if __name__ == "__main__":
    # Small shapes consistent with the module (scaled-down in_c; embed_dim=64).
    B, C_in, H, W = 2, 128, 16, 16
    E = 64

    key = jax.random.PRNGKey(0)
    kx, kw, kb = jax.random.split(key, 3)

    x = jax.random.normal(kx, (B, C_in, H, W), dtype=jnp.float32)
    # Synthetic Conv2d(C_in, E, kernel_size=1) parameters:
    # weight (E, C_in, 1, 1) squeezed to (E, C_in), bias (E,).
    weight = jax.random.normal(kw, (E, C_in), dtype=jnp.float32) * 0.02
    bias = jax.random.normal(kb, (E,), dtype=jnp.float32) * 0.02

    out = jax.block_until_ready(jax.jit(fix_embed_forward)(x, weight, bias))

    # Pure-JAX reference of the PyTorch forward (norm_layer=None -> Identity).
    ref_conv = jnp.einsum(
        "bchw,ec->behw", x, weight, precision=jax.lax.Precision.HIGHEST
    ) + bias[None, :, None, None]
    ref = jnp.transpose(ref_conv, (0, 2, 1, 3)).reshape(B, H, E * W)

    assert out.shape == (B, H, E * W), out.shape
    err = float(jnp.max(jnp.abs(out - ref)))
    assert jnp.allclose(out, ref, atol=2e-3, rtol=2e-3), f"max abs err {err}"

    print("KERNEL_OK")
</pallas_src>

<mosaic_0001>
module attributes {stable_mosaic.version = 11 : i64} {
  func.func @_fix_embed_kernel(%arg0: i32, %arg1: i32, %arg2: memref<1x128x256xf32, #tpu.memory_space<vmem>>, %arg3: memref<64x128xf32, #tpu.memory_space<vmem>>, %arg4: memref<64x1xf32, #tpu.memory_space<vmem>>, %arg5: memref<1x16x64x16xf32, #tpu.memory_space<vmem>>) attributes {dimension_semantics = [#tpu.dimension_semantics<parallel>, #tpu.dimension_semantics<parallel>], iteration_bounds = array<i64: 2, 1>, scalar_prefetch = 0 : i64, scratch_operands = 0 : i64, tpu.core_type = #tpu.core_type<tc>, window_params = [{transform_indices = @transform_0, window_bounds = array<i64: 1, 128, 256>}, {pipeline_mode = #tpu.pipeline_mode<synchronous>, transform_indices = @transform_1, window_bounds = array<i64: 64, 128>}, {pipeline_mode = #tpu.pipeline_mode<synchronous>, transform_indices = @transform_2, window_bounds = array<i64: 64, 1>}, {transform_indices = @transform_3, window_bounds = array<i64: 1, 16, 64, 16>}]} {
    %c0 = arith.constant 0 : index
    %c0_0 = arith.constant 0 : index
    %0 = vector.load %arg3[%c0, %c0_0] : memref<64x128xf32, #tpu.memory_space<vmem>>, vector<64x128xf32>
    %c0_1 = arith.constant 0 : index
    %c0_2 = arith.constant 0 : index
    %c0_3 = arith.constant 0 : index
    %1 = vector.load %arg2[%c0_1, %c0_2, %c0_3] : memref<1x128x256xf32, #tpu.memory_space<vmem>>, vector<1x128x256xf32>
    %2 = vector.shape_cast %1 : vector<1x128x256xf32> to vector<128x256xf32>
    %cst = arith.constant dense<0.000000e+00> : vector<64x256xf32>
    %3 = tpu.matmul %0, %2, %cst {dimension_numbers = #tpu.dot_dimension_numbers<[1], [0], [0], [1], [0, 0, 1, 1], [], []>} : vector<64x128xf32>, vector<128x256xf32>, vector<64x256xf32> -> vector<64x256xf32>
    %c0_4 = arith.constant 0 : index
    %c0_5 = arith.constant 0 : index
    %4 = vector.load %arg4[%c0_4, %c0_5] : memref<64x1xf32, #tpu.memory_space<vmem>>, vector<64x1xf32>
    %5 = vector.broadcast %4 : vector<64x1xf32> to vector<64x256xf32>
    %6 = arith.addf %3, %5 : vector<64x256xf32>
    %7 = vector.extract_strided_slice %6 {offsets = [0, 0], sizes = [64, 16], strides = [1, 1]} : vector<64x256xf32> to vector<64x16xf32>
    %c0_6 = arith.constant 0 : index
    %c0_7 = arith.constant 0 : index
    %c0_8 = arith.constant 0 : index
    %c0_9 = arith.constant 0 : index
    %8 = vector.load %arg5[%c0_6, %c0_7, %c0_8, %c0_9] : memref<1x16x64x16xf32, #tpu.memory_space<vmem>>, vector<1x1x64x16xf32>
    %9 = vector.shape_cast %8 : vector<1x1x64x16xf32> to vector<64x16xf32>
    %10 = vector.shape_cast %7 : vector<64x16xf32> to vector<1x1x64x16xf32>
    tpu.vector_store %arg5[%c0_6, %c0_7, %c0_8, %c0_9], %10 {strides = array<i32>} : memref<1x16x64x16xf32, #tpu.memory_space<vmem>>, vector<1x1x64x16xf32>,
    %11 = vector.extract_strided_slice %6 {offsets = [0, 16], sizes = [64, 16], strides = [1, 1]} : vector<64x256xf32> to vector<64x16xf32>
    %c0_10 = arith.constant 0 : index
    %c1 = arith.constant 1 : index
    %c0_11 = arith.constant 0 : index
    %c0_12 = arith.constant 0 : index
    %12 = vector.load %arg5[%c0_10, %c1, %c0_11, %c0_12] : memref<1x16x64x16xf32, #tpu.memory_space<vmem>>, vector<1x1x64x16xf32>
    %13 = vector.shape_cast %12 : vector<1x1x64x16xf32> to vector<64x16xf32>
    %14 = vector.shape_cast %11 : vector<64x16xf32> to vector<1x1x64x16xf32>
    tpu.vector_store %arg5[%c0_10, %c1, %c0_11, %c0_12], %14 {strides = array<i32>} : memref<1x16x64x16xf32, #tpu.memory_space<vmem>>, vector<1x1x64x16xf32>,
    %15 = vector.extract_strided_slice %6 {offsets = [0, 32], sizes = [64, 16], strides = [1, 1]} : vector<64x256xf32> to vector<64x16xf32>
    %c0_13 = arith.constant 0 : index
    %c2 = arith.constant 2 : index
    %c0_14 = arith.constant 0 : index
    %c0_15 = arith.constant 0 : index
    %16 = vector.load %arg5[%c0_13, %c2, %c0_14, %c0_15] : memref<1x16x64x16xf32, #tpu.memory_space<vmem>>, vector<1x1x64x16xf32>
    %17 = vector.shape_cast %16 : vector<1x1x64x16xf32> to vector<64x16xf32>
    %18 = vector.shape_cast %15 : vector<64x16xf32> to vector<1x1x64x16xf32>
    tpu.vector_store %arg5[%c0_13, %c2, %c0_14, %c0_15], %18 {strides = array<i32>} : memref<1x16x64x16xf32, #tpu.memory_space<vmem>>, vector<1x1x64x16xf32>,
    %19 = vector.extract_strided_slice %6 {offsets = [0, 48], sizes = [64, 16], strides = [1, 1]} : vector<64x256xf32> to vector<64x16xf32>
    %c0_16 = arith.constant 0 : index
    %c3 = arith.constant 3 : index
    %c0_17 = arith.constant 0 : index
    %c0_18 = arith.constant 0 : index
    %20 = vector.load %arg5[%c0_16, %c3, %c0_17, %c0_18] : memref<1x16x64x16xf32, #tpu.memory_space<vmem>>, vector<1x1x64x16xf32>
    %21 = vector.shape_cast %20 : vector<1x1x64x16xf32> to vector<64x16xf32>
    %22 = vector.shape_cast %19 : vector<64x16xf32> to vector<1x1x64x16xf32>
    tpu.vector_store %arg5[%c0_16, %c3, %c0_17, %c0_18], %22 {strides = array<i32>} : memref<1x16x64x16xf32, #tpu.memory_space<vmem>>, vector<1x1x64x16xf32>,
    %23 = vector.extract_strided_slice %6 {offsets = [0, 64], sizes = [64, 16], strides = [1, 1]} : vector<64x256xf32> to vector<64x16xf32>
    %c0_19 = arith.constant 0 : index
    %c4 = arith.constant 4 : index
    %c0_20 = arith.constant 0 : index
    %c0_21 = arith.constant 0 : index
    %24 = vector.load %arg5[%c0_19, %c4, %c0_20, %c0_21] : memref<1x16x64x16xf32, #tpu.memory_space<vmem>>, vector<1x1x64x16xf32>
    %25 = vector.shape_cast %24 : vector<1x1x64x16xf32> to vector<64x16xf32>
    %26 = vector.shape_cast %23 : vector<64x16xf32> to vector<1x1x64x16xf32>
    tpu.vector_store %arg5[%c0_19, %c4, %c0_20, %c0_21], %26 {strides = array<i32>} : memref<1x16x64x16xf32, #tpu.memory_space<vmem>>, vector<1x1x64x16xf32>,
    %27 = vector.extract_strided_slice %6 {offsets = [0, 80], sizes = [64, 16], strides = [1, 1]} : vector<64x256xf32> to vector<64x16xf32>
    %c0_22 = arith.constant 0 : index
    %c5 = arith.constant 5 : index
    %c0_23 = arith.constant 0 : index
    %c0_24 = arith.constant 0 : index
    %28 = vector.load %arg5[%c0_22, %c5, %c0_23, %c0_24] : memref<1x16x64x16xf32, #tpu.memory_space<vmem>>, vector<1x1x64x16xf32>
    %29 = vector.shape_cast %28 : vector<1x1x64x16xf32> to vector<64x16xf32>
    %30 = vector.shape_cast %27 : vector<64x16xf32> to vector<1x1x64x16xf32>
    tpu.vector_store %arg5[%c0_22, %c5, %c0_23, %c0_24], %30 {strides = array<i32>} : memref<1x16x64x16xf32, #tpu.memory_space<vmem>>, vector<1x1x64x16xf32>,
    %31 = vector.extract_strided_slice %6 {offsets = [0, 96], sizes = [64, 16], strides = [1, 1]} : vector<64x256xf32> to vector<64x16xf32>
    %c0_25 = arith.constant 0 : index
    %c6 = arith.constant 6 : index
    %c0_26 = arith.constant 0 : index
    %c0_27 = arith.constant 0 : index
    %32 = vector.load %arg5[%c0_25, %c6, %c0_26, %c0_27] : memref<1x16x64x16xf32, #tpu.memory_space<vmem>>, vector<1x1x64x16xf32>
    %33 = vector.shape_cast %32 : vector<1x1x64x16xf32> to vector<64x16xf32>
    %34 = vector.shape_cast %31 : vector<64x16xf32> to vector<1x1x64x16xf32>
    tpu.vector_store %arg5[%c0_25, %c6, %c0_26, %c0_27], %34 {strides = array<i32>} : memref<1x16x64x16xf32, #tpu.memory_space<vmem>>, vector<1x1x64x16xf32>,
    %35 = vector.extract_strided_slice %6 {offsets = [0, 112], sizes = [64, 16], strides = [1, 1]} : vector<64x256xf32> to vector<64x16xf32>
    %c0_28 = arith.constant 0 : index
    %c7 = arith.constant 7 : index
    %c0_29 = arith.constant 0 : index
    %c0_30 = arith.constant 0 : index
    %36 = vector.load %arg5[%c0_28, %c7, %c0_29, %c0_30] : memref<1x16x64x16xf32, #tpu.memory_space<vmem>>, vector<1x1x64x16xf32>
    %37 = vector.shape_cast %36 : vector<1x1x64x16xf32> to vector<64x16xf32>
    %38 = vector.shape_cast %35 : vector<64x16xf32> to vector<1x1x64x16xf32>
    tpu.vector_store %arg5[%c0_28, %c7, %c0_29, %c0_30], %38 {strides = array<i32>} : memref<1x16x64x16xf32, #tpu.memory_space<vmem>>, vector<1x1x64x16xf32>,
    %39 = vector.extract_strided_slice %6 {offsets = [0, 128], sizes = [64, 16], strides = [1, 1]} : vector<64x256xf32> to vector<64x16xf32>
    %c0_31 = arith.constant 0 : index
    %c8 = arith.constant 8 : index
    %c0_32 = arith.constant 0 : index
    %c0_33 = arith.constant 0 : index
    %40 = vector.load %arg5[%c0_31, %c8, %c0_32, %c0_33] : memref<1x16x64x16xf32, #tpu.memory_space<vmem>>, vector<1x1x64x16xf32>
    %41 = vector.shape_cast %40 : vector<1x1x64x16xf32> to vector<64x16xf32>
    %42 = vector.shape_cast %39 : vector<64x16xf32> to vector<1x1x64x16xf32>
    tpu.vector_store %arg5[%c0_31, %c8, %c0_32, %c0_33], %42 {strides = array<i32>} : memref<1x16x64x16xf32, #tpu.memory_space<vmem>>, vector<1x1x64x16xf32>,
    %43 = vector.extract_strided_slice %6 {offsets = [0, 144], sizes = [64, 16], strides = [1, 1]} : vector<64x256xf32> to vector<64x16xf32>
    %c0_34 = arith.constant 0 : index
    %c9 = arith.constant 9 : index
    %c0_35 = arith.constant 0 : index
    %c0_36 = arith.constant 0 : index
    %44 = vector.load %arg5[%c0_34, %c9, %c0_35, %c0_36] : memref<1x16x64x16xf32, #tpu.memory_space<vmem>>, vector<1x1x64x16xf32>
    %45 = vector.shape_cast %44 : vector<1x1x64x16xf32> to vector<64x16xf32>
    %46 = vector.shape_cast %43 : vector<64x16xf32> to vector<1x1x64x16xf32>
    tpu.vector_store %arg5[%c0_34, %c9, %c0_35, %c0_36], %46 {strides = array<i32>} : memref<1x16x64x16xf32, #tpu.memory_space<vmem>>, vector<1x1x64x16xf32>,
    %47 = vector.extract_strided_slice %6 {offsets = [0, 160], sizes = [64, 16], strides = [1, 1]} : vector<64x256xf32> to vector<64x16xf32>
    %c0_37 = arith.constant 0 : index
    %c10 = arith.constant 10 : index
    %c0_38 = arith.constant 0 : index
    %c0_39 = arith.constant 0 : index
    %48 = vector.load %arg5[%c0_37, %c10, %c0_38, %c0_39] : memref<1x16x64x16xf32, #tpu.memory_space<vmem>>, vector<1x1x64x16xf32>
    %49 = vector.shape_cast %48 : vector<1x1x64x16xf32> to vector<64x16xf32>
    %50 = vector.shape_cast %47 : vector<64x16xf32> to vector<1x1x64x16xf32>
    tpu.vector_store %arg5[%c0_37, %c10, %c0_38, %c0_39], %50 {strides = array<i32>} : memref<1x16x64x16xf32, #tpu.memory_space<vmem>>, vector<1x1x64x16xf32>,
    %51 = vector.extract_strided_slice %6 {offsets = [0, 176], sizes = [64, 16], strides = [1, 1]} : vector<64x256xf32> to vector<64x16xf32>
    %c0_40 = arith.constant 0 : index
    %c11 = arith.constant 11 : index
    %c0_41 = arith.constant 0 : index
    %c0_42 = arith.constant 0 : index
    %52 = vector.load %arg5[%c0_40, %c11, %c0_41, %c0_42] : memref<1x16x64x16xf32, #tpu.memory_space<vmem>>, vector<1x1x64x16xf32>
    %53 = vector.shape_cast %52 : vector<1x1x64x16xf32> to vector<64x16xf32>
    %54 = vector.shape_cast %51 : vector<64x16xf32> to vector<1x1x64x16xf32>
    tpu.vector_store %arg5[%c0_40, %c11, %c0_41, %c0_42], %54 {strides = array<i32>} : memref<1x16x64x16xf32, #tpu.memory_space<vmem>>, vector<1x1x64x16xf32>,
    %55 = vector.extract_strided_slice %6 {offsets = [0, 192], sizes = [64, 16], strides = [1, 1]} : vector<64x256xf32> to vector<64x16xf32>
    %c0_43 = arith.constant 0 : index
    %c12 = arith.constant 12 : index
    %c0_44 = arith.constant 0 : index
    %c0_45 = arith.constant 0 : index
    %56 = vector.load %arg5[%c0_43, %c12, %c0_44, %c0_45] : memref<1x16x64x16xf32, #tpu.memory_space<vmem>>, vector<1x1x64x16xf32>
    %57 = vector.shape_cast %56 : vector<1x1x64x16xf32> to vector<64x16xf32>
    %58 = vector.shape_cast %55 : vector<64x16xf32> to vector<1x1x64x16xf32>
    tpu.vector_store %arg5[%c0_43, %c12, %c0_44, %c0_45], %58 {strides = array<i32>} : memref<1x16x64x16xf32, #tpu.memory_space<vmem>>, vector<1x1x64x16xf32>,
    %59 = vector.extract_strided_slice %6 {offsets = [0, 208], sizes = [64, 16], strides = [1, 1]} : vector<64x256xf32> to vector<64x16xf32>
    %c0_46 = arith.constant 0 : index
    %c13 = arith.constant 13 : index
    %c0_47 = arith.constant 0 : index
    %c0_48 = arith.constant 0 : index
    %60 = vector.load %arg5[%c0_46, %c13, %c0_47, %c0_48] : memref<1x16x64x16xf32, #tpu.memory_space<vmem>>, vector<1x1x64x16xf32>
    %61 = vector.shape_cast %60 : vector<1x1x64x16xf32> to vector<64x16xf32>
    %62 = vector.shape_cast %59 : vector<64x16xf32> to vector<1x1x64x16xf32>
    tpu.vector_store %arg5[%c0_46, %c13, %c0_47, %c0_48], %62 {strides = array<i32>} : memref<1x16x64x16xf32, #tpu.memory_space<vmem>>, vector<1x1x64x16xf32>,
    %63 = vector.extract_strided_slice %6 {offsets = [0, 224], sizes = [64, 16], strides = [1, 1]} : vector<64x256xf32> to vector<64x16xf32>
    %c0_49 = arith.constant 0 : index
    %c14 = arith.constant 14 : index
    %c0_50 = arith.constant 0 : index
    %c0_51 = arith.constant 0 : index
    %64 = vector.load %arg5[%c0_49, %c14, %c0_50, %c0_51] : memref<1x16x64x16xf32, #tpu.memory_space<vmem>>, vector<1x1x64x16xf32>
    %65 = vector.shape_cast %64 : vector<1x1x64x16xf32> to vector<64x16xf32>
    %66 = vector.shape_cast %63 : vector<64x16xf32> to vector<1x1x64x16xf32>
    tpu.vector_store %arg5[%c0_49, %c14, %c0_50, %c0_51], %66 {strides = array<i32>} : memref<1x16x64x16xf32, #tpu.memory_space<vmem>>, vector<1x1x64x16xf32>,
    %67 = vector.extract_strided_slice %6 {offsets = [0, 240], sizes = [64, 16], strides = [1, 1]} : vector<64x256xf32> to vector<64x16xf32>
    %c0_52 = arith.constant 0 : index
    %c15 = arith.constant 15 : index
    %c0_53 = arith.constant 0 : index
    %c0_54 = arith.constant 0 : index
    %68 = vector.load %arg5[%c0_52, %c15, %c0_53, %c0_54] : memref<1x16x64x16xf32, #tpu.memory_space<vmem>>, vector<1x1x64x16xf32>
    %69 = vector.shape_cast %68 : vector<1x1x64x16xf32> to vector<64x16xf32>
    %70 = vector.shape_cast %67 : vector<64x16xf32> to vector<1x1x64x16xf32>
    tpu.vector_store %arg5[%c0_52, %c15, %c0_53, %c0_54], %70 {strides = array<i32>} : memref<1x16x64x16xf32, #tpu.memory_space<vmem>>, vector<1x1x64x16xf32>,
    return
  }
  func.func @transform_0(%arg0: i32, %arg1: i32) -> (i32, i32, i32) {
    %c0_i32 = arith.constant 0 : i32
    %c0_i32_0 = arith.constant 0 : i32
    return %arg0, %c0_i32, %arg1 : i32, i32, i32
  }
  func.func @transform_1(%arg0: i32, %arg1: i32) -> (i32, i32) {
    %c0_i32 = arith.constant 0 : i32
    %c0_i32_0 = arith.constant 0 : i32
    %c0_i32_1 = arith.constant 0 : i32
    return %c0_i32, %c0_i32_0 : i32, i32
  }
  func.func @transform_2(%arg0: i32, %arg1: i32) -> (i32, i32) {
    %c0_i32 = arith.constant 0 : i32
    %c0_i32_0 = arith.constant 0 : i32
    %c0_i32_1 = arith.constant 0 : i32
    return %c0_i32, %c0_i32_0 : i32, i32
  }
  func.func @transform_3(%arg0: i32, %arg1: i32) -> (i32, i32, i32, i32) {
    %c0_i32 = arith.constant 0 : i32
    %c0_i32_0 = arith.constant 0 : i32
    %c0_i32_1 = arith.constant 0 : i32
    return %arg0, %arg1, %c0_i32, %c0_i32_0 : i32, i32, i32, i32
  }
}

</mosaic_0001>

<llo_original>
// kernel: fix_embed_forward.1
$region0: #{fix_embed_forward.1}
  #allocation0 [shape = 'u32[]', space=smem, size = 0x4, offset = 0x4, fixed_abs, tag = 'smem constant byte address 0x4 - core index']
  #allocation1 [shape = 'u32[144,128]{1,0:T(1,128)}', space=vmem, size = 0x12000, scoped, tag = 'internal scratch']
  %s0 = inlined_call_operand.vmem [shape: f32[2,128,256], index: 0, kind: input, shape index: {}]
  %s1 = inlined_call_operand.vmem [shape: f32[64,128], index: 1, kind: input, shape index: {}]
  %s2 = inlined_call_operand.vmem [shape: f32[64,1], index: 2, kind: input, shape index: {}]
  %s3 = inlined_call_operand.vmem [shape: f32[2,16,64,16], index: 3, kind: output, shape index: {}]
  %s4 = sld [smem:[#allocation0]]
  $region45: #{fix_embed_forward.1} parent=0
    _
  %s6 = ssub.s32 1, %s4
  %s7 = scalar_select 0, %s6, %s4
  loop: start=0, step=1, limit=4
  $region2: #{fix_embed_forward.1} parent=0 // loop_pre_header
    _
  $region3: #{fix_embed_forward.1} parent=0 // loop_header
    %s9 = sphi 0, %s13
    %p10 = scmp.ge.s32.totalorder %s9, 4
    %s16 = sphi 0, %s28
    %s17 = sphi 0, %s24
    %s18 = sphi 0, %s16
    %s19 = sphi 0, %s17
    %s20 = sphi 0, %s18
    %s21 = sphi 0, %s19
    %s33 = sphi 0, %s35
    %s36 = sphi 0, %s33
    %s37 = sphi 0, %s36
    %s53 = sphi 0, %s37
    %s57 = sphi 0, %s57
    %s59 = sphi 0, %s57
    %s60 = sphi 0, %s59
    %s74 = sphi 0, %s60
    %s78 = sphi 0, %s78
    %s80 = sphi 0, %s78
    %s81 = sphi 0, %s80
    %s95 = sphi 0, %s81
    %s103 = sphi 0, %s105
    %s106 = sphi 0, %s103
    %s107 = sphi 0, %s106
    %s123 = sphi 0, %s107
  $region4: #{fix_embed_forward.1} parent=0 // loop_header_branch
    %12 = sbr.rel (%p10) target = $region8
  $region5: #{fix_embed_forward.1} parent=0 // loop_body
    %s14 = ssub.s32 %s9, 1
    %s15 = ssub.s32 %s9, 2
    %s22 = sadd.s32 1, %s17
    %p23 = scmp.ge.s32.totalorder %s22, 1
    %s24 = scalar_select %p23, 0, %s22
    %s25 = sadd.s32 1, %s16
    %s26 = scalar_select %p23, %s25, %s16
    %p27 = scmp.ge.s32.totalorder %s26, 2
    %s28 = scalar_select %p27, 0, %s26
    %s29 = ssub.s32 %s16, %s28
    %s30 = ssub.s32 %s17, %s24
    %s31 = sor.u32 %s29, %s30
    %p32 = scmp.eq.s32.totalorder %s31, 0
    %s34 = sadd.s32 %s33, 1
    %s35 = scalar_select %p32, %s33, %s34
    %p38 = pneg %p32
    %p39 = scmp.eq.s32.totalorder %s9, 1
    %p40 = por %p38, %p39
    %p41 = scmp.ne.s32.totalorder %s33, %s36
    %p42 = scmp.eq.s32.totalorder %s9, 0
    %p43 = por %p41, %p42
    %p44 = scmp.ne.s32.totalorder %s33, %s36
    %p45 = scmp.eq.s32.totalorder %s14, 1
    %p46 = por %p44, %p45
    %p47 = scmp.ne.s32.totalorder %s36, %s37
    %p48 = scmp.eq.s32.totalorder %s14, 0
    %p49 = por %p47, %p48
    %p50 = scmp.ne.s32.totalorder %s36, %s37
    %p51 = scmp.eq.s32.totalorder %s15, 1
    %p52 = por %p50, %p51
    %p54 = scmp.ne.s32.totalorder %s37, %s53
    %p55 = scmp.eq.s32.totalorder %s15, 0
    %p56 = por %p54, %p55
    %s58 = sadd.s32 %s57, 1
    %p61 = scmp.eq.s32.totalorder %s9, 1
    %p62 = scmp.ne.s32.totalorder %s57, %s59
    %p63 = scmp.eq.s32.totalorder %s9, 0
    %p64 = por %p62, %p63
    %p65 = scmp.ne.s32.totalorder %s57, %s59
    %p66 = scmp.eq.s32.totalorder %s14, 1
    %p67 = por %p65, %p66
    %p68 = scmp.ne.s32.totalorder %s59, %s60
    %p69 = scmp.eq.s32.totalorder %s14, 0
    %p70 = por %p68, %p69
    %p71 = scmp.ne.s32.totalorder %s59, %s60
    %p72 = scmp.eq.s32.totalorder %s15, 1
    %p73 = por %p71, %p72
    %p75 = scmp.ne.s32.totalorder %s60, %s74
    %p76 = scmp.eq.s32.totalorder %s15, 0
    %p77 = por %p75, %p76
    %s79 = sadd.s32 %s78, 1
    %p82 = scmp.eq.s32.totalorder %s9, 1
    %p83 = scmp.ne.s32.totalorder %s78, %s80
    %p84 = scmp.eq.s32.totalorder %s9, 0
    %p85 = por %p83, %p84
    %p86 = scmp.ne.s32.totalorder %s78, %s80
    %p87 = scmp.eq.s32.totalorder %s14, 1
    %p88 = por %p86, %p87
    %p89 = scmp.ne.s32.totalorder %s80, %s81
    %p90 = scmp.eq.s32.totalorder %s14, 0
    %p91 = por %p89, %p90
    %p92 = scmp.ne.s32.totalorder %s80, %s81
    %p93 = scmp.eq.s32.totalorder %s15, 1
    %p94 = por %p92, %p93
    %p96 = scmp.ne.s32.totalorder %s81, %s95
    %p97 = scmp.eq.s32.totalorder %s15, 0
    %p98 = por %p96, %p97
    %s99 = ssub.s32 %s16, %s28
    %s100 = ssub.s32 %s17, %s24
    %s101 = sor.u32 %s99, %s100
    %p102 = scmp.eq.s32.totalorder %s101, 0
    %s104 = sadd.s32 %s103, 1
    %s105 = scalar_select %p102, %s103, %s104
    %p108 = pneg %p102
    %p109 = scmp.eq.s32.totalorder %s9, 1
    %p110 = por %p108, %p109
    %p111 = scmp.ne.s32.totalorder %s103, %s106
    %p112 = scmp.eq.s32.totalorder %s9, 0
    %p113 = por %p111, %p112
    %p114 = scmp.ne.s32.totalorder %s103, %s106
    %p115 = scmp.eq.s32.totalorder %s14, 1
    %p116 = por %p114, %p115
    %p117 = scmp.ne.s32.totalorder %s106, %s107
    %p118 = scmp.eq.s32.totalorder %s14, 0
    %p119 = por %p117, %p118
    %p120 = scmp.ne.s32.totalorder %s106, %s107
    %p121 = scmp.eq.s32.totalorder %s15, 1
    %p122 = por %p120, %p121
    %p124 = scmp.ne.s32.totalorder %s107, %s123
    %p125 = scmp.eq.s32.totalorder %s15, 0
    %p126 = por %p124, %p125
    %p127 = scmp.le.s32.totalorder 1, %s9
    %p128 = scmp.lt.s32.totalorder %s9, 3
    %p129 = pnand %p127, %p128
    %p130 = pneg %p129
    // Predicated region
    $region9: #{fix_embed_forward.1} parent=5 // pred_check
      _
    $region10: #{fix_embed_forward.1} parent=5 // pred_check_branch
      %132 = sbr.rel (%p129) target = $region12
    $region11: #{fix_embed_forward.1} parent=5 // pred_region
      %s133 = ssub.s32 %s9, 1
      // Predicated region
      $region13: #{fix_embed_forward.1} parent=11 // pred_check
        %p134 = pneg %p70
      $region14: #{fix_embed_forward.1} parent=11 // pred_check_branch
        %136 = sbr.rel (%p134) target = $region16
      $region15: #{fix_embed_forward.1} parent=11 // pred_region
        _
      $region16: #{fix_embed_forward.1} parent=11 // pred_fallthru
        _
      // Predicated region
      $region17: #{fix_embed_forward.1} parent=11 // pred_check
        %p137 = pneg %p91
      $region18: #{fix_embed_forward.1} parent=11 // pred_check_branch
        %139 = sbr.rel (%p137) target = $region20
      $region19: #{fix_embed_forward.1} parent=11 // pred_region
        _
      $region20: #{fix_embed_forward.1} parent=11 // pred_fallthru
        _
    $region12: #{fix_embed_forward.1} parent=5 // pred_fallthru
      _
    %p140 = scmp.lt.s32.totalorder %s9, 2
    // Predicated region
    $region21: #{fix_embed_forward.1} parent=5 // pred_check
      %p141 = pneg %p140
    $region22: #{fix_embed_forward.1} parent=5 // pred_check_branch
      %143 = sbr.rel (%p141) target = $region24
    $region23: #{fix_embed_forward.1} parent=5 // pred_region
      // Predicated region
      $region25: #{fix_embed_forward.1} parent=23 // pred_check
        %p144 = pneg %p43
      $region26: #{fix_embed_forward.1} parent=23 // pred_check_branch
        %146 = sbr.rel (%p144) target = $region28
      $region27: #{fix_embed_forward.1} parent=23 // pred_region
        %s147 = smul.u32 2, %s17
        %p148 = scmp.lt.s32.totalorder %s16, 1
        %s149 = scalar_select %p148, %s16, 1
        %p150 = scmp.lt.s32.totalorder %s147, 1
        %s151 = scalar_select %p150, %s147, 1
        %s152 = smul.addr %s149, 32
        %s153 = sadd.s32 %s151, %s152
        %s154 = smul.addr %s153, 8
        %s155 = scalar_lea.vmem %s0, %s154
        %s156 = smul.u32 2, %s17
      $region28: #{fix_embed_forward.1} parent=23 // pred_fallthru
        _
    $region24: #{fix_embed_forward.1} parent=5 // pred_fallthru
      _
    %p157 = scmp.le.s32.totalorder 1, %s9
    %p158 = scmp.lt.s32.totalorder %s9, 3
    %p159 = pnand %p157, %p158
    %p160 = pneg %p159
    // Predicated region
    $region29: #{fix_embed_forward.1} parent=5 // pred_check
      _
    $region30: #{fix_embed_forward.1} parent=5 // pred_check_branch
      %162 = sbr.rel (%p159) target = $region32
    $region31: #{fix_embed_forward.1} parent=5 // pred_region
      %s163 = ssub.s32 %s9, 1
      %s164 = smul.u32 2, %s19
      %p165 = scmp.lt.s32.totalorder %s18, 1
      %s166 = scalar_select %p165, %s18, 1
      %p167 = scmp.lt.s32.totalorder %s164, 1
      %s168 = scalar_select %p167, %s164, 1
      %s169 = smul.addr %s166, 32
      %s170 = sadd.s32 %s168, %s169
      %s171 = smul.addr %s170, 8
      %s172 = scalar_lea.vmem %s0, %s171
      %p173 = pneg %p49
      %p174 = pneg %p46
      %p175 = pneg %p70
      %p176 = pneg %p67
      %p177 = pneg %p91
      %p178 = pneg %p88
      %p179 = pneg %p119
      %p180 = pneg %p116
      %s181 = smul.u32 16, %s19
      %p182 = scmp.lt.s32.totalorder %s18, 1
      %s183 = scalar_select %p182, %s18, 1
      %p184 = scmp.lt.s32.totalorder %s181, 15
      %s185 = scalar_select %p184, %s181, 15
      %s186 = smul.addr %s185, 8
      %s187 = smul.addr %s183, 128
      %s188 = sadd.s32 %s186, %s187
      %s189 = smul.addr %s188, 8
      %s190 = scalar_lea.vmem %s3, %s189
      %s191 = smul.u32 2, %s19
      %p192 = scmp.lt.s32.totalorder %s18, 1
      %s193 = scalar_select %p192, %s18, 1
      %p194 = scmp.lt.s32.totalorder %s191, 1
      %s195 = scalar_select %p194, %s191, 1
      %s196 = smul.addr %s193, 32
      %s197 = sadd.s32 %s195, %s196
      %s198 = smul.addr %s197, 8
      %s199 = scalar_lea.vmem %s0, %s198
      %s200 = smul.u32 2, %s19
      %s201 = smul.u32 16, %s19
      %p202 = scmp.lt.s32.totalorder %s18, 1
      %s203 = scalar_select %p202, %s18, 1
      %p204 = scmp.lt.s32.totalorder %s201, 15
      %s205 = scalar_select %p204, %s201, 15
      %s206 = smul.addr %s205, 8
      %s207 = smul.addr %s203, 128
      %s208 = sadd.s32 %s206, %s207
      %s209 = smul.addr %s208, 8
      %s210 = scalar_lea.vmem %s3, %s209
      %s211 = smul.u32 16, %s19
      %v212 = vld [vmem:[%s1] sm:$0xff]
      %v213 = vld [vmem:[%s1 + $0x8] sm:$0xff]
      %v214 = vld [vmem:[%s1 + $0x10] sm:$0xff]
      %v215 = vld [vmem:[%s1 + $0x18] sm:$0xff]
      %v216 = vld [vmem:[%s1 + $0x20] sm:$0xff]
      %v217 = vld [vmem:[%s1 + $0x28] sm:$0xff]
      %v218 = vld [vmem:[%s1 + $0x30] sm:$0xff]
      %v219 = vld [vmem:[%s1 + $0x38] sm:$0xff]
      %v220 = vld [vmem:[%s199] sm:$0xff]
      %v221 = vld [vmem:[%s199 + $0x8] sm:$0xff]
      %v222 = vld [vmem:[%s199 + $0x10] sm:$0xff]
      %v223 = vld [vmem:[%s199 + $0x18] sm:$0xff]
      %v224 = vld [vmem:[%s199 + $0x20] sm:$0xff]
      %v225 = vld [vmem:[%s199 + $0x28] sm:$0xff]
      %v226 = vld [vmem:[%s199 + $0x30] sm:$0xff]
      %v227 = vld [vmem:[%s199 + $0x38] sm:$0xff]
      %v228 = vld [vmem:[%s199 + $0x40] sm:$0xff]
      %v229 = vld [vmem:[%s199 + $0x48] sm:$0xff]
      %v230 = vld [vmem:[%s199 + $0x50] sm:$0xff]
      %v231 = vld [vmem:[%s199 + $0x58] sm:$0xff]
      %v232 = vld [vmem:[%s199 + $0x60] sm:$0xff]
      %v233 = vld [vmem:[%s199 + $0x68] sm:$0xff]
      %v234 = vld [vmem:[%s199 + $0x70] sm:$0xff]
      %v235 = vld [vmem:[%s199 + $0x78] sm:$0xff]
      %v236 = vld [vmem:[%s199 + $0x80] sm:$0xff]
      %v237 = vld [vmem:[%s199 + $0x88] sm:$0xff]
      %v238 = vld [vmem:[%s199 + $0x90] sm:$0xff]
      %v239 = vld [vmem:[%s199 + $0x98] sm:$0xff]
      %v240 = vld [vmem:[%s199 + $0xa0] sm:$0xff]
      %v241 = vld [vmem:[%s199 + $0xa8] sm:$0xff]
      %v242 = vld [vmem:[%s199 + $0xb0] sm:$0xff]
      %v243 = vld [vmem:[%s199 + $0xb8] sm:$0xff]
      %v244 = vld [vmem:[%s199 + $0xc0] sm:$0xff]
      %v245 = vld [vmem:[%s199 + $0xc8] sm:$0xff]
      %v246 = vld [vmem:[%s199 + $0xd0] sm:$0xff]
      %v247 = vld [vmem:[%s199 + $0xd8] sm:$0xff]
      %v248 = vld [vmem:[%s199 + $0xe0] sm:$0xff]
      %v249 = vld [vmem:[%s199 + $0xe8] sm:$0xff]
      %v250 = vld [vmem:[%s199 + $0xf0] sm:$0xff]
      %v251 = vld [vmem:[%s199 + $0xf8] sm:$0xff]
      %v252 = vld [vmem:[%s2] sm:$0xff]
      %v253 = vld [vmem:[%s2 + $0x8] sm:$0xff]
      %v254 = vld [vmem:[%s2 + $0x10] sm:$0xff]
      %v255 = vld [vmem:[%s2 + $0x18] sm:$0xff]
      %v256 = vld [vmem:[%s2 + $0x20] sm:$0xff]
      %v257 = vld [vmem:[%s2 + $0x28] sm:$0xff]
      %v258 = vld [vmem:[%s2 + $0x30] sm:$0xff]
      %v259 = vld [vmem:[%s2 + $0x38] sm:$0xff]
      %261 = vset.pattern.permute.xlu0 0
      %262 = vperm.xlu0 %261, %v252
      %v263 = vpop.permute.xlu0 %262
      %266 = vset.pattern.permute.xlu0 0
      %267 = vperm.xlu0 %266, %v253
      %v268 = vpop.permute.xlu0 %267
      %271 = vset.pattern.permute.xlu0 0
      %272 = vperm.xlu0 %271, %v254
      %v273 = vpop.permute.xlu0 %272
      %276 = vset.pattern.permute.xlu0 0
      %277 = vperm.xlu0 %276, %v255
      %v278 = vpop.permute.xlu0 %277
      %281 = vset.pattern.permute.xlu0 0
      %282 = vperm.xlu0 %281, %v256
      %v283 = vpop.permute.xlu0 %282
      %286 = vset.pattern.permute.xlu0 0
      %287 = vperm.xlu0 %286, %v257
      %v288 = vpop.permute.xlu0 %287
      %291 = vset.pattern.permute.xlu0 0
      %292 = vperm.xlu0 %291, %v258
      %v293 = vpop.permute.xlu0 %292
      %296 = vset.pattern.permute.xlu0 0
      %297 = vperm.xlu0 %296, %v259
      %v298 = vpop.permute.xlu0 %297
      %300 = vmatprep.subr.mxu0 %v221
      %301 = vmatpush1.msra.mxu0 %v220
      %302 = vmatprep.subr.mxu0 %v223
      %303 = vmatpush1.msra.mxu0 %v222
      %304 = vmatprep.subr.mxu0 %v225
      %305 = vmatpush1.msra.mxu0 %v224
      %306 = vmatprep.subr.mxu0 %v227
      %307 = vmatpush1.msra.mxu0 %v226
      %308 = vmatprep.subr.mxu0 %v229
      %309 = vmatpush1.msra.mxu0 %v228
      %310 = vmatprep.subr.mxu0 %v231
      %311 = vmatpush1.msra.mxu0 %v230
      %312 = vmatprep.subr.mxu0 %v233
      %313 = vmatpush1.msra.mxu0 %v232
      %314 = vmatprep.subr.mxu0 %v235
      %315 = vmatpush1.msra.mxu0 %v234
      %316 = vmatprep.subr.mxu0 %v237
      %317 = vmatpush1.msra.mxu0 %v236
      %318 = vmatprep.subr.mxu0 %v239
      %319 = vmatpush1.msra.mxu0 %v238
      %320 = vmatprep.subr.mxu0 %v241
      %321 = vmatpush1.msra.mxu0 %v240
      %322 = vmatprep.subr.mxu0 %v243
      %323 = vmatpush1.msra.mxu0 %v242
      %324 = vmatprep.subr.mxu0 %v245
      %325 = vmatpush1.msra.mxu0 %v244
      %326 = vmatprep.subr.mxu0 %v247
      %327 = vmatpush1.msra.mxu0 %v246
      %328 = vmatprep.subr.mxu0 %v249
      %329 = vmatpush1.msra.mxu0 %v248
      %330 = vmatprep.subr.mxu0 %v251
      %331 = vmatpush1.msra.mxu0 %v250
      %332 = vmatprep.subr.mxu0 0.0
      %333 = vmatpush1.msra.mxu0 0.0
      %334 = vmatprep.subr.mxu0 0.0
      %335 = vmatpush1.msra.mxu0 0.0
      %336 = vmatprep.subr.mxu0 0.0
      %337 = vmatpush1.msra.mxu0 0.0
      %338 = vmatprep.subr.mxu0 0.0
      %339 = vmatpush1.msra.mxu0 0.0
      %340 = vmatprep.subr.mxu0 0.0
      %341 = vmatpush1.msra.mxu0 0.0
      %342 = vmatprep.subr.mxu0 0.0
      %343 = vmatpush1.msra.mxu0 0.0
      %344 = vmatprep.subr.mxu0 0.0
      %345 = vmatpush1.msra.mxu0 0.0
      %346 = vmatprep.subr.mxu0 0.0
      %347 = vmatpush1.msra.mxu0 0.0
      %348 = vmatprep.subr.mxu0 0.0
      %349 = vmatpush1.msra.mxu0 0.0
      %350 = vmatprep.subr.mxu0 0.0
      %351 = vmatpush1.msra.mxu0 0.0
      %352 = vmatprep.subr.mxu0 0.0
      %353 = vmatpush1.msra.mxu0 0.0
      %354 = vmatprep.subr.mxu0 0.0
      %355 = vmatpush1.msra.mxu0 0.0
      %356 = vmatprep.subr.mxu0 0.0
      %357 = vmatpush1.msra.mxu0 0.0
      %358 = vmatprep.subr.mxu0 0.0
      %359 = vmatpush1.msra.mxu0 0.0
      %360 = vmatprep.subr.mxu0 0.0
      %361 = vmatpush1.msra.mxu0 0.0
      %362 = vmatprep.subr.mxu0 0.0
      %363 = vmatpush1.msra.mxu0 0.0
      %364 = vmatprep.mubr.f32.mxu0 0.0
      %365 = vmatmul.mubr.f32.gmra.mrb[0].mxu0 %v212
      %v366 = vpop.f32.mrb[0].mxu0
      %v367 = vadd.f32 %v263, %v366
      %v368 = vpop.f32.mrb[0].mxu0
      %v369 = vadd.f32 %v263, %v368
      %370 = vmatprep.mubr.f32.mxu0 0.0
      %371 = vmatmul.mubr.f32.gmra.mrb[0].mxu0 %v213
      %v372 = vpop.f32.mrb[0].mxu0
      %v373 = vadd.f32 %v268, %v372
      %v374 = vpop.f32.mrb[0].mxu0
      %v375 = vadd.f32 %v268, %v374
      %376 = vmatprep.mubr.f32.mxu0 0.0
      %377 = vmatmul.mubr.f32.gmra.mrb[0].mxu0 %v214
      %v378 = vpop.f32.mrb[0].mxu0
      %v379 = vadd.f32 %v273, %v378
      %v380 = vpop.f32.mrb[0].mxu0
      %v381 = vadd.f32 %v273, %v380
      %382 = vmatprep.mubr.f32.mxu0 0.0
      %383 = vmatmul.mubr.f32.gmra.mrb[0].mxu0 %v215
      %v384 = vpop.f32.mrb[0].mxu0
      %v385 = vadd.f32 %v278, %v384
      %v386 = vpop.f32.mrb[0].mxu0
      %v387 = vadd.f32 %v278, %v386
      %388 = vmatprep.mubr.f32.mxu0 0.0
      %389 = vmatmul.mubr.f32.gmra.mrb[0].mxu0 %v216
      %v390 = vpop.f32.mrb[0].mxu0
      %v391 = vadd.f32 %v283, %v390
      %v392 = vpop.f32.mrb[0].mxu0
      %v393 = vadd.f32 %v283, %v392
      %394 = vmatprep.mubr.f32.mxu0 0.0
      %395 = vmatmul.mubr.f32.gmra.mrb[0].mxu0 %v217
      %v396 = vpop.f32.mrb[0].mxu0
      %v397 = vadd.f32 %v288, %v396
      %v398 = vpop.f32.mrb[0].mxu0
      %v399 = vadd.f32 %v288, %v398
      %400 = vmatprep.mubr.f32.mxu0 0.0
      %401 = vmatmul.mubr.f32.gmra.mrb[0].mxu0 %v218
      %v402 = vpop.f32.mrb[0].mxu0
      %v403 = vadd.f32 %v293, %v402
      %v404 = vpop.f32.mrb[0].mxu0
      %v405 = vadd.f32 %v293, %v404
      %406 = vmatprep.mubr.f32.mxu0 0.0
      %407 = vmatmul.mubr.f32.gmra.mrb[0].mxu0 %v219
      %v408 = vpop.f32.mrb[0].mxu0
      %v409 = vadd.f32 %v298, %v408
      %v410 = vpop.f32.mrb[0].mxu0
      %v411 = vadd.f32 %v298, %v410
      %412 = vdwg.mxu0
      %vm413 = vcmask 130048
      %414 = vst.msk [vmem:[%s210] sm:$0xff] %vm413, %v367
      %415 = vst.msk [vmem:[%s210 + $0x8] sm:$0xff] %vm413, %v373
      %416 = vst.msk [vmem:[%s210 + $0x10] sm:$0xff] %vm413, %v379
      %417 = vst.msk [vmem:[%s210 + $0x18] sm:$0xff] %vm413, %v385
      %418 = vst.msk [vmem:[%s210 + $0x20] sm:$0xff] %vm413, %v391
      %419 = vst.msk [vmem:[%s210 + $0x28] sm:$0xff] %vm413, %v397
      %420 = vst.msk [vmem:[%s210 + $0x30] sm:$0xff] %vm413, %v403
      %421 = vst.msk [vmem:[%s210 + $0x38] sm:$0xff] %vm413, %v409
      %430 = vrot.lane.b32.xlu0 %v367, 112
      %v431 = vpop.permute.xlu0 %430
      %432 = vrot.lane.b32.xlu0 %v373, 112
      %v433 = vpop.permute.xlu0 %432
      %434 = vrot.lane.b32.xlu0 %v379, 112
      %v435 = vpop.permute.xlu0 %434
      %436 = vrot.lane.b32.xlu0 %v385, 112
      %v437 = vpop.permute.xlu0 %436
      %438 = vrot.lane.b32.xlu0 %v391, 112
      %v439 = vpop.permute.xlu0 %438
      %440 = vrot.lane.b32.xlu0 %v397, 112
      %v441 = vpop.permute.xlu0 %440
      %442 = vrot.lane.b32.xlu0 %v403, 112
      %v443 = vpop.permute.xlu0 %442
      %444 = vrot.lane.b32.xlu0 %v409, 112
      %v445 = vpop.permute.xlu0 %444
      %s454 = scalar_lea.vmem %s210, 64
      %455 = vst.msk [vmem:[%s454] sm:$0xff] %vm413, %v431
      %456 = vst.msk [vmem:[%s454 + $0x8] sm:$0xff] %vm413, %v433
      %457 = vst.msk [vmem:[%s454 + $0x10] sm:$0xff] %vm413, %v435
      %458 = vst.msk [vmem:[%s454 + $0x18] sm:$0xff] %vm413, %v437
      %459 = vst.msk [vmem:[%s454 + $0x20] sm:$0xff] %vm413, %v439
      %460 = vst.msk [vmem:[%s454 + $0x28] sm:$0xff] %vm413, %v441
      %461 = vst.msk [vmem:[%s454 + $0x30] sm:$0xff] %vm413, %v443
      %462 = vst.msk [vmem:[%s454 + $0x38] sm:$0xff] %vm413, %v445
      %463 = vrot.lane.b32.xlu0 %v367, 96
      %v464 = vpop.permute.xlu0 %463
      %465 = vrot.lane.b32.xlu0 %v373, 96
      %v466 = vpop.permute.xlu0 %465
      %467 = vrot.lane.b32.xlu0 %v379, 96
      %v468 = vpop.permute.xlu0 %467
      %469 = vrot.lane.b32.xlu0 %v385, 96
      %v470 = vpop.permute.xlu0 %469
      %471 = vrot.lane.b32.xlu0 %v391, 96
      %v472 = vpop.permute.xlu0 %471
      %473 = vrot.lane.b32.xlu0 %v397, 96
      %v474 = vpop.permute.xlu0 %473
      %475 = vrot.lane.b32.xlu0 %v403, 96
      %v476 = vpop.permute.xlu0 %475
      %477 = vrot.lane.b32.xlu0 %v409, 96
      %v478 = vpop.permute.xlu0 %477
      %s487 = scalar_lea.vmem %s210, 128
      %488 = vst.msk [vmem:[%s487] sm:$0xff] %vm413, %v464
      %489 = vst.msk [vmem:[%s487 + $0x8] sm:$0xff] %vm413, %v466
      %490 = vst.msk [vmem:[%s487 + $0x10] sm:$0xff] %vm413, %v468
      %491 = vst.msk [vmem:[%s487 + $0x18] sm:$0xff] %vm413, %v470
      %492 = vst.msk [vmem:[%s487 + $0x20] sm:$0xff] %vm413, %v472
      %493 = vst.msk [vmem:[%s487 + $0x28] sm:$0xff] %vm413, %v474
      %494 = vst.msk [vmem:[%s487 + $0x30] sm:$0xff] %vm413, %v476
      %495 = vst.msk [vmem:[%s487 + $0x38] sm:$0xff] %vm413, %v478
      %496 = vrot.lane.b32.xlu0 %v367, 80
      %v497 = vpop.permute.xlu0 %496
      %498 = vrot.lane.b32.xlu0 %v373, 80
      %v499 = vpop.permute.xlu0 %498
      %500 = vrot.lane.b32.xlu0 %v379, 80
      %v501 = vpop.permute.xlu0 %500
      %502 = vrot.lane.b32.xlu0 %v385, 80
      %v503 = vpop.permute.xlu0 %502
      %504 = vrot.lane.b32.xlu0 %v391, 80
      %v505 = vpop.permute.xlu0 %504
      %506 = vrot.lane.b32.xlu0 %v397, 80
      %v507 = vpop.permute.xlu0 %506
      %508 = vrot.lane.b32.xlu0 %v403, 80
      %v509 = vpop.permute.xlu0 %508
      %510 = vrot.lane.b32.xlu0 %v409, 80
      %v511 = vpop.permute.xlu0 %510
      %s520 = scalar_lea.vmem %s210, 192
      %521 = vst.msk [vmem:[%s520] sm:$0xff] %vm413, %v497
      %522 = vst.msk [vmem:[%s520 + $0x8] sm:$0xff] %vm413, %v499
      %523 = vst.msk [vmem:[%s520 + $0x10] sm:$0xff] %vm413, %v501
      %524 = vst.msk [vmem:[%s520 + $0x18] sm:$0xff] %vm413, %v503
      %525 = vst.msk [vmem:[%s520 + $0x20] sm:$0xff] %vm413, %v505
      %526 = vst.msk [vmem:[%s520 + $0x28] sm:$0xff] %vm413, %v507
      %527 = vst.msk [vmem:[%s520 + $0x30] sm:$0xff] %vm413, %v509
      %528 = vst.msk [vmem:[%s520 + $0x38] sm:$0xff] %vm413, %v511
      %529 = vrot.lane.b32.xlu0 %v367, 64
      %v530 = vpop.permute.xlu0 %529
      %531 = vrot.lane.b32.xlu0 %v373, 64
      %v532 = vpop.permute.xlu0 %531
      %533 = vrot.lane.b32.xlu0 %v379, 64
      %v534 = vpop.permute.xlu0 %533
      %535 = vrot.lane.b32.xlu0 %v385, 64
      %v536 = vpop.permute.xlu0 %535
      %537 = vrot.lane.b32.xlu0 %v391, 64
      %v538 = vpop.permute.xlu0 %537
      %539 = vrot.lane.b32.xlu0 %v397, 64
      %v540 = vpop.permute.xlu0 %539
      %541 = vrot.lane.b32.xlu0 %v403, 64
      %v542 = vpop.permute.xlu0 %541
      %543 = vrot.lane.b32.xlu0 %v409, 64
      %v544 = vpop.permute.xlu0 %543
      %s553 = scalar_lea.vmem %s210, 256
      %554 = vst.msk [vmem:[%s553] sm:$0xff] %vm413, %v530
      %555 = vst.msk [vmem:[%s553 + $0x8] sm:$0xff] %vm413, %v532
      %556 = vst.msk [vmem:[%s553 + $0x10] sm:$0xff] %vm413, %v534
      %557 = vst.msk [vmem:[%s553 + $0x18] sm:$0xff] %vm413, %v536
      %558 = vst.msk [vmem:[%s553 + $0x20] sm:$0xff] %vm413, %v538
      %559 = vst.msk [vmem:[%s553 + $0x28] sm:$0xff] %vm413, %v540
      %560 = vst.msk [vmem:[%s553 + $0x30] sm:$0xff] %vm413, %v542
      %561 = vst.msk [vmem:[%s553 + $0x38] sm:$0xff] %vm413, %v544
      %562 = vrot.lane.b32.xlu0 %v367, 48
      %v563 = vpop.permute.xlu0 %562
      %564 = vrot.lane.b32.xlu0 %v373, 48
      %v565 = vpop.permute.xlu0 %564
      %566 = vrot.lane.b32.xlu0 %v379, 48
      %v567 = vpop.permute.xlu0 %566
      %568 = vrot.lane.b32.xlu0 %v385, 48
      %v569 = vpop.permute.xlu0 %568
      %570 = vrot.lane.b32.xlu0 %v391, 48
      %v571 = vpop.permute.xlu0 %570
      %572 = vrot.lane.b32.xlu0 %v397, 48
      %v573 = vpop.permute.xlu0 %572
      %574 = vrot.lane.b32.xlu0 %v403, 48
      %v575 = vpop.permute.xlu0 %574
      %576 = vrot.lane.b32.xlu0 %v409, 48
      %v577 = vpop.permute.xlu0 %576
      %s586 = scalar_lea.vmem %s210, 320
      %587 = vst.msk [vmem:[%s586] sm:$0xff] %vm413, %v563
      %588 = vst.msk [vmem:[%s586 + $0x8] sm:$0xff] %vm413, %v565
      %589 = vst.msk [vmem:[%s586 + $0x10] sm:$0xff] %vm413, %v567
      %590 = vst.msk [vmem:[%s586 + $0x18] sm:$0xff] %vm413, %v569
      %591 = vst.msk [vmem:[%s586 + $0x20] sm:$0xff] %vm413, %v571
      %592 = vst.msk [vmem:[%s586 + $0x28] sm:$0xff] %vm413, %v573
      %593 = vst.msk [vmem:[%s586 + $0x30] sm:$0xff] %vm413, %v575
      %594 = vst.msk [vmem:[%s586 + $0x38] sm:$0xff] %vm413, %v577
      %595 = vrot.lane.b32.xlu0 %v367, 32
      %v596 = vpop.permute.xlu0 %595
      %597 = vrot.lane.b32.xlu0 %v373, 32
      %v598 = vpop.permute.xlu0 %597
      %599 = vrot.lane.b32.xlu0 %v379, 32
      %v600 = vpop.permute.xlu0 %599
      %601 = vrot.lane.b32.xlu0 %v385, 32
      %v602 = vpop.permute.xlu0 %601
      %603 = vrot.lane.b32.xlu0 %v391, 32
      %v604 = vpop.permute.xlu0 %603
      %605 = vrot.lane.b32.xlu0 %v397, 32
      %v606 = vpop.permute.xlu0 %605
      %607 = vrot.lane.b32.xlu0 %v403, 32
      %v608 = vpop.permute.xlu0 %607
      %609 = vrot.lane.b32.xlu0 %v409, 32
      %v610 = vpop.permute.xlu0 %609
      %s619 = scalar_lea.vmem %s210, 384
      %620 = vst.msk [vmem:[%s619] sm:$0xff] %vm413, %v596
      %621 = vst.msk [vmem:[%s619 + $0x8] sm:$0xff] %vm413, %v598
      %622 = vst.msk [vmem:[%s619 + $0x10] sm:$0xff] %vm413, %v600
      %623 = vst.msk [vmem:[%s619 + $0x18] sm:$0xff] %vm413, %v602
      %624 = vst.msk [vmem:[%s619 + $0x20] sm:$0xff] %vm413, %v604
      %625 = vst.msk [vmem:[%s619 + $0x28] sm:$0xff] %vm413, %v606
      %626 = vst.msk [vmem:[%s619 + $0x30] sm:$0xff] %vm413, %v608
      %627 = vst.msk [vmem:[%s619 + $0x38] sm:$0xff] %vm413, %v610
      %628 = vrot.lane.b32.xlu0 %v367, 16
      %v629 = vpop.permute.xlu0 %628
      %630 = vrot.lane.b32.xlu0 %v373, 16
      %v631 = vpop.permute.xlu0 %630
      %632 = vrot.lane.b32.xlu0 %v379, 16
      %v633 = vpop.permute.xlu0 %632
      %634 = vrot.lane.b32.xlu0 %v385, 16
      %v635 = vpop.permute.xlu0 %634
      %636 = vrot.lane.b32.xlu0 %v391, 16
      %v637 = vpop.permute.xlu0 %636
      %638 = vrot.lane.b32.xlu0 %v397, 16
      %v639 = vpop.permute.xlu0 %638
      %640 = vrot.lane.b32.xlu0 %v403, 16
      %v641 = vpop.permute.xlu0 %640
      %642 = vrot.lane.b32.xlu0 %v409, 16
      %v643 = vpop.permute.xlu0 %642
      %s652 = scalar_lea.vmem %s210, 448
      %653 = vst.msk [vmem:[%s652] sm:$0xff] %vm413, %v629
      %654 = vst.msk [vmem:[%s652 + $0x8] sm:$0xff] %vm413, %v631
      %655 = vst.msk [vmem:[%s652 + $0x10] sm:$0xff] %vm413, %v633
      %656 = vst.msk [vmem:[%s652 + $0x18] sm:$0xff] %vm413, %v635
      %657 = vst.msk [vmem:[%s652 + $0x20] sm:$0xff] %vm413, %v637
      %658 = vst.msk [vmem:[%s652 + $0x28] sm:$0xff] %vm413, %v639
      %659 = vst.msk [vmem:[%s652 + $0x30] sm:$0xff] %vm413, %v641
      %660 = vst.msk [vmem:[%s652 + $0x38] sm:$0xff] %vm413, %v643
      %s661 = scalar_lea.vmem %s210, 512
      %662 = vst.msk [vmem:[%s661] sm:$0xff] %vm413, %v369
      %663 = vst.msk [vmem:[%s661 + $0x8] sm:$0xff] %vm413, %v375
      %664 = vst.msk [vmem:[%s661 + $0x10] sm:$0xff] %vm413, %v381
      %665 = vst.msk [vmem:[%s661 + $0x18] sm:$0xff] %vm413, %v387
      %666 = vst.msk [vmem:[%s661 + $0x20] sm:$0xff] %vm413, %v393
      %667 = vst.msk [vmem:[%s661 + $0x28] sm:$0xff] %vm413, %v399
      %668 = vst.msk [vmem:[%s661 + $0x30] sm:$0xff] %vm413, %v405
      %669 = vst.msk [vmem:[%s661 + $0x38] sm:$0xff] %vm413, %v411
      %678 = vrot.lane.b32.xlu0 %v369, 112
      %v679 = vpop.permute.xlu0 %678
      %680 = vrot.lane.b32.xlu0 %v375, 112
      %v681 = vpop.permute.xlu0 %680
      %682 = vrot.lane.b32.xlu0 %v381, 112
      %v683 = vpop.permute.xlu0 %682
      %684 = vrot.lane.b32.xlu0 %v387, 112
      %v685 = vpop.permute.xlu0 %684
      %686 = vrot.lane.b32.xlu0 %v393, 112
      %v687 = vpop.permute.xlu0 %686
      %688 = vrot.lane.b32.xlu0 %v399, 112
      %v689 = vpop.permute.xlu0 %688
      %690 = vrot.lane.b32.xlu0 %v405, 112
      %v691 = vpop.permute.xlu0 %690
      %692 = vrot.lane.b32.xlu0 %v411, 112
      %v693 = vpop.permute.xlu0 %692
      %s702 = scalar_lea.vmem %s210, 576
      %703 = vst.msk [vmem:[%s702] sm:$0xff] %vm413, %v679
      %704 = vst.msk [vmem:[%s702 + $0x8] sm:$0xff] %vm413, %v681
      %705 = vst.msk [vmem:[%s702 + $0x10] sm:$0xff] %vm413, %v683
      %706 = vst.msk [vmem:[%s702 + $0x18] sm:$0xff] %vm413, %v685
      %707 = vst.msk [vmem:[%s702 + $0x20] sm:$0xff] %vm413, %v687
      %708 = vst.msk [vmem:[%s702 + $0x28] sm:$0xff] %vm413, %v689
      %709 = vst.msk [vmem:[%s702 + $0x30] sm:$0xff] %vm413, %v691
      %710 = vst.msk [vmem:[%s702 + $0x38] sm:$0xff] %vm413, %v693
      %711 = vrot.lane.b32.xlu0 %v369, 96
      %v712 = vpop.permute.xlu0 %711
      %713 = vrot.lane.b32.xlu0 %v375, 96
      %v714 = vpop.permute.xlu0 %713
      %715 = vrot.lane.b32.xlu0 %v381, 96
      %v716 = vpop.permute.xlu0 %715
      %717 = vrot.lane.b32.xlu0 %v387, 96
      %v718 = vpop.permute.xlu0 %717
      %719 = vrot.lane.b32.xlu0 %v393, 96
      %v720 = vpop.permute.xlu0 %719
      %721 = vrot.lane.b32.xlu0 %v399, 96
      %v722 = vpop.permute.xlu0 %721
      %723 = vrot.lane.b32.xlu0 %v405, 96
      %v724 = vpop.permute.xlu0 %723
      %725 = vrot.lane.b32.xlu0 %v411, 96
      %v726 = vpop.permute.xlu0 %725
      %s735 = scalar_lea.vmem %s210, 640
      %736 = vst.msk [vmem:[%s735] sm:$0xff] %vm413, %v712
      %737 = vst.msk [vmem:[%s735 + $0x8] sm:$0xff] %vm413, %v714
      %738 = vst.msk [vmem:[%s735 + $0x10] sm:$0xff] %vm413, %v716
      %739 = vst.msk [vmem:[%s735 + $0x18] sm:$0xff] %vm413, %v718
      %740 = vst.msk [vmem:[%s735 + $0x20] sm:$0xff] %vm413, %v720
      %741 = vst.msk [vmem:[%s735 + $0x28] sm:$0xff] %vm413, %v722
      %742 = vst.msk [vmem:[%s735 + $0x30] sm:$0xff] %vm413, %v724
      %743 = vst.msk [vmem:[%s735 + $0x38] sm:$0xff] %vm413, %v726
      %744 = vrot.lane.b32.xlu0 %v369, 80
      %v745 = vpop.permute.xlu0 %744
      %746 = vrot.lane.b32.xlu0 %v375, 80
      %v747 = vpop.permute.xlu0 %746
      %748 = vrot.lane.b32.xlu0 %v381, 80
      %v749 = vpop.permute.xlu0 %748
      %750 = vrot.lane.b32.xlu0 %v387, 80
      %v751 = vpop.permute.xlu0 %750
      %752 = vrot.lane.b32.xlu0 %v393, 80
      %v753 = vpop.permute.xlu0 %752
      %754 = vrot.lane.b32.xlu0 %v399, 80
      %v755 = vpop.permute.xlu0 %754
      %756 = vrot.lane.b32.xlu0 %v405, 80
      %v757 = vpop.permute.xlu0 %756
      %758 = vrot.lane.b32.xlu0 %v411, 80
      %v759 = vpop.permute.xlu0 %758
      %s768 = scalar_lea.vmem %s210, 704
      %769 = vst.msk [vmem:[%s768] sm:$0xff] %vm413, %v745
      %770 = vst.msk [vmem:[%s768 + $0x8] sm:$0xff] %vm413, %v747
      %771 = vst.msk [vmem:[%s768 + $0x10] sm:$0xff] %vm413, %v749
      %772 = vst.msk [vmem:[%s768 + $0x18] sm:$0xff] %vm413, %v751
      %773 = vst.msk [vmem:[%s768 + $0x20] sm:$0xff] %vm413, %v753
      %774 = vst.msk [vmem:[%s768 + $0x28] sm:$0xff] %vm413, %v755
      %775 = vst.msk [vmem:[%s768 + $0x30] sm:$0xff] %vm413, %v757
      %776 = vst.msk [vmem:[%s768 + $0x38] sm:$0xff] %vm413, %v759
      %777 = vrot.lane.b32.xlu0 %v369, 64
      %v778 = vpop.permute.xlu0 %777
      %779 = vrot.lane.b32.xlu0 %v375, 64
      %v780 = vpop.permute.xlu0 %779
      %781 = vrot.lane.b32.xlu0 %v381, 64
      %v782 = vpop.permute.xlu0 %781
      %783 = vrot.lane.b32.xlu0 %v387, 64
      %v784 = vpop.permute.xlu0 %783
      %785 = vrot.lane.b32.xlu0 %v393, 64
      %v786 = vpop.permute.xlu0 %785
      %787 = vrot.lane.b32.xlu0 %v399, 64
      %v788 = vpop.permute.xlu0 %787
      %789 = vrot.lane.b32.xlu0 %v405, 64
      %v790 = vpop.permute.xlu0 %789
      %791 = vrot.lane.b32.xlu0 %v411, 64
      %v792 = vpop.permute.xlu0 %791
      %s801 = scalar_lea.vmem %s210, 768
      %802 = vst.msk [vmem:[%s801] sm:$0xff] %vm413, %v778
      %803 = vst.msk [vmem:[%s801 + $0x8] sm:$0xff] %vm413, %v780
      %804 = vst.msk [vmem:[%s801 + $0x10] sm:$0xff] %vm413, %v782
      %805 = vst.msk [vmem:[%s801 + $0x18] sm:$0xff] %vm413, %v784
      %806 = vst.msk [vmem:[%s801 + $0x20] sm:$0xff] %vm413, %v786
      %807 = vst.msk [vmem:[%s801 + $0x28] sm:$0xff] %vm413, %v788
      %808 = vst.msk [vmem:[%s801 + $0x30] sm:$0xff] %vm413, %v790
      %809 = vst.msk [vmem:[%s801 + $0x38] sm:$0xff] %vm413, %v792
      %810 = vrot.lane.b32.xlu0 %v369, 48
      %v811 = vpop.permute.xlu0 %810
      %812 = vrot.lane.b32.xlu0 %v375, 48
      %v813 = vpop.permute.xlu0 %812
      %814 = vrot.lane.b32.xlu0 %v381, 48
      %v815 = vpop.permute.xlu0 %814
      %816 = vrot.lane.b32.xlu0 %v387, 48
      %v817 = vpop.permute.xlu0 %816
      %818 = vrot.lane.b32.xlu0 %v393, 48
      %v819 = vpop.permute.xlu0 %818
      %820 = vrot.lane.b32.xlu0 %v399, 48
      %v821 = vpop.permute.xlu0 %820
      %822 = vrot.lane.b32.xlu0 %v405, 48
      %v823 = vpop.permute.xlu0 %822
      %824 = vrot.lane.b32.xlu0 %v411, 48
      %v825 = vpop.permute.xlu0 %824
      %s834 = scalar_lea.vmem %s210, 832
      %835 = vst.msk [vmem:[%s834] sm:$0xff] %vm413, %v811
      %836 = vst.msk [vmem:[%s834 + $0x8] sm:$0xff] %vm413, %v813
      %837 = vst.msk [vmem:[%s834 + $0x10] sm:$0xff] %vm413, %v815
      %838 = vst.msk [vmem:[%s834 + $0x18] sm:$0xff] %vm413, %v817
      %839 = vst.msk [vmem:[%s834 + $0x20] sm:$0xff] %vm413, %v819
      %840 = vst.msk [vmem:[%s834 + $0x28] sm:$0xff] %vm413, %v821
      %841 = vst.msk [vmem:[%s834 + $0x30] sm:$0xff] %vm413, %v823
      %842 = vst.msk [vmem:[%s834 + $0x38] sm:$0xff] %vm413, %v825
      %843 = vrot.lane.b32.xlu0 %v369, 32
      %v844 = vpop.permute.xlu0 %843
      %845 = vrot.lane.b32.xlu0 %v375, 32
      %v846 = vpop.permute.xlu0 %845
      %847 = vrot.lane.b32.xlu0 %v381, 32
      %v848 = vpop.permute.xlu0 %847
      %849 = vrot.lane.b32.xlu0 %v387, 32
      %v850 = vpop.permute.xlu0 %849
      %851 = vrot.lane.b32.xlu0 %v393, 32
      %v852 = vpop.permute.xlu0 %851
      %853 = vrot.lane.b32.xlu0 %v399, 32
      %v854 = vpop.permute.xlu0 %853
      %855 = vrot.lane.b32.xlu0 %v405, 32
      %v856 = vpop.permute.xlu0 %855
      %857 = vrot.lane.b32.xlu0 %v411, 32
      %v858 = vpop.permute.xlu0 %857
      %s867 = scalar_lea.vmem %s210, 896
      %868 = vst.msk [vmem:[%s867] sm:$0xff] %vm413, %v844
      %869 = vst.msk [vmem:[%s867 + $0x8] sm:$0xff] %vm413, %v846
      %870 = vst.msk [vmem:[%s867 + $0x10] sm:$0xff] %vm413, %v848
      %871 = vst.msk [vmem:[%s867 + $0x18] sm:$0xff] %vm413, %v850
      %872 = vst.msk [vmem:[%s867 + $0x20] sm:$0xff] %vm413, %v852
      %873 = vst.msk [vmem:[%s867 + $0x28] sm:$0xff] %vm413, %v854
      %874 = vst.msk [vmem:[%s867 + $0x30] sm:$0xff] %vm413, %v856
      %875 = vst.msk [vmem:[%s867 + $0x38] sm:$0xff] %vm413, %v858
      %876 = vrot.lane.b32.xlu0 %v369, 16
      %v877 = vpop.permute.xlu0 %876
      %878 = vrot.lane.b32.xlu0 %v375, 16
      %v879 = vpop.permute.xlu0 %878
      %880 = vrot.lane.b32.xlu0 %v381, 16
      %v881 = vpop.permute.xlu0 %880
      %882 = vrot.lane.b32.xlu0 %v387, 16
      %v883 = vpop.permute.xlu0 %882
      %884 = vrot.lane.b32.xlu0 %v393, 16
      %v885 = vpop.permute.xlu0 %884
      %886 = vrot.lane.b32.xlu0 %v399, 16
      %v887 = vpop.permute.xlu0 %886
      %888 = vrot.lane.b32.xlu0 %v405, 16
      %v889 = vpop.permute.xlu0 %888
      %890 = vrot.lane.b32.xlu0 %v411, 16
      %v891 = vpop.permute.xlu0 %890
      %s900 = scalar_lea.vmem %s210, 960
      %901 = vst.msk [vmem:[%s900] sm:$0xff] %vm413, %v877
      %902 = vst.msk [vmem:[%s900 + $0x8] sm:$0xff] %vm413, %v879
      %903 = vst.msk [vmem:[%s900 + $0x10] sm:$0xff] %vm413, %v881
      %904 = vst.msk [vmem:[%s900 + $0x18] sm:$0xff] %vm413, %v883
      %905 = vst.msk [vmem:[%s900 + $0x20] sm:$0xff] %vm413, %v885
      %906 = vst.msk [vmem:[%s900 + $0x28] sm:$0xff] %vm413, %v887
      %907 = vst.msk [vmem:[%s900 + $0x30] sm:$0xff] %vm413, %v889
      %908 = vst.msk [vmem:[%s900 + $0x38] sm:$0xff] %vm413, %v891
      %s909 = smul.u32 16, %s19
      %p910 = scmp.lt.s32.totalorder %s18, 1
      %s911 = scalar_select %p910, %s18, 1
      %p912 = scmp.lt.s32.totalorder %s909, 15
      %s913 = scalar_select %p912, %s909, 15
      %s914 = smul.addr %s913, 8
      %s915 = smul.addr %s911, 128
      %s916 = sadd.s32 %s914, %s915
      %s917 = smul.addr %s916, 8
      %s918 = scalar_lea.vmem %s3, %s917
      // Predicated region
      $region33: #{fix_embed_forward.1} parent=31 // pred_check
        %p919 = pneg %p116
      $region34: #{fix_embed_forward.1} parent=31 // pred_check_branch
        %921 = sbr.rel (%p919) target = $region36
      $region35: #{fix_embed_forward.1} parent=31 // pred_region
        %s922 = smul.u32 16, %s19
      $region36: #{fix_embed_forward.1} parent=31 // pred_fallthru
        _
    $region32: #{fix_embed_forward.1} parent=5 // pred_fallthru
      _
    %p923 = scmp.le.s32.totalorder 2, %s9
    // Predicated region
    $region37: #{fix_embed_forward.1} parent=5 // pred_check
      %p924 = pneg %p923
    $region38: #{fix_embed_forward.1} parent=5 // pred_check_branch
      %926 = sbr.rel (%p924) target = $region40
    $region39: #{fix_embed_forward.1} parent=5 // pred_region
      %s927 = ssub.s32 %s9, 2
      // Predicated region
      $region41: #{fix_embed_forward.1} parent=39 // pred_check
        %p928 = pneg %p122
      $region42: #{fix_embed_forward.1} parent=39 // pred_check_branch
        %930 = sbr.rel (%p928) target = $region44
      $region43: #{fix_embed_forward.1} parent=39 // pred_region
        %s931 = smul.u32 16, %s21
        %p932 = scmp.lt.s32.totalorder %s20, 1
        %s933 = scalar_select %p932, %s20, 1
        %p934 = scmp.lt.s32.totalorder %s931, 15
        %s935 = scalar_select %p934, %s931, 15
        %s936 = smul.addr %s935, 8
        %s937 = smul.addr %s933, 128
        %s938 = sadd.s32 %s936, %s937
        %s939 = smul.addr %s938, 8
        %s940 = scalar_lea.vmem %s3, %s939
      $region44: #{fix_embed_forward.1} parent=39 // pred_fallthru
        _
    $region40: #{fix_embed_forward.1} parent=5 // pred_fallthru
      _
  $region6: #{fix_embed_forward.1} parent=0 // loop_footer
    %s13 = sadd.s32 1, %s9
  $region7: #{fix_embed_forward.1} parent=0 // loop_footer_branch
    %8 = sbr.rel target = $region3
  $region8: #{fix_embed_forward.1} parent=0 // loop_exit
    _

</llo_original>
